<compile_context>
chip_gen: v5e
topology: v5e:2x2
jax: 0.10.0
libtpu: 0.0.40
codegen_flags: <defaults>
</compile_context>

<pallas_src>
from typing import NamedTuple

import jax
import jax.numpy as jnp
from jax.experimental import pallas as pl
from jax.experimental.pallas import tpu as pltpu

TWO_PI = 3.1415926 * 2.0   # matches the literal constant used by the module
HIDDEN = 100               # nn.Linear hidden width in the module
H_PAD = 128                # lane-aligned hidden width
LANE = 128
SUBLANE = 8


def _round_up(x, m):
    return ((x + m - 1) // m) * m


def _cdiv(a, b):
    return (a + b - 1) // b


class URFGeometry(NamedTuple):
    K: int
    M: int
    M_RF: int
    N: int
    D_in: int
    D_in_pad: int
    D_out: int
    D_out_pad: int
    TK: int
    n_k: int


def _u_rf_mlp_kernel(h_ref, w1_ref, b1_ref, w2_ref, b2_ref, w3_ref, b3_ref,
                     cos_ref, sin_ref, acc_ref):
    """One step of the tiled 3-layer MLP.

    Grid = (batch blocks, layer-1 reduction over D_in).  acc_ref accumulates
    the layer-1 pre-activation in f32; the last reduction step runs layers
    2/3 and the cos/sin epilogue into two lane-dense outputs.
    """
    k = pl.program_id(1)

    @pl.when(k == 0)
    def _init():
        acc_ref[...] = jnp.zeros_like(acc_ref)

    # (TB, TK) @ (TK, 128) -> (TB, 128), bf16 (or f32) inputs, f32 accumulate.
    acc_ref[...] += jnp.dot(h_ref[...], w1_ref[...],
                            preferred_element_type=jnp.float32)

    @pl.when(k == pl.num_programs(1) - 1)
    def _finalize():
        z1 = jax.nn.sigmoid(acc_ref[...] + b1_ref[...])
        z2 = jax.nn.sigmoid(
            jnp.dot(z1, w2_ref[...], preferred_element_type=jnp.float32)
            + b2_ref[...])
        z3 = jax.nn.sigmoid(
            jnp.dot(z2, w3_ref[...], preferred_element_type=jnp.float32)
            + b3_ref[...])
        angles = z3 * TWO_PI
        cos_ref[...] = jnp.cos(angles)
        sin_ref[...] = jnp.sin(angles)


def prepare_u_rf_params(params, *, K, M, M_RF, N,
                        w1_dtype=jnp.bfloat16, tk_target=8192):
    """Pad / cast the weights ONCE (call at init, reuse across forwards).

    w1 (the only large tensor) is stored in `w1_dtype` (bf16 by default) to
    halve its HBM stream; w2/w3/biases stay f32.  Zero padding preserves
    exactness: sigmoid(0)=0.5 in padded hidden lanes is annihilated by the
    zero-filled rows of the next layer's weights, and padded output lanes are
    sliced off by the wrapper.
    """
    w1, b1, w2, b2, w3, b3 = params
    D_in = 2 * K * M * N
    D_out = K * M * M_RF
    D_out_pad = _round_up(D_out, LANE)

    # Tile the layer-1 reduction with at most one extra 128-column slab of
    # zero weight per tile (never round D_in all the way up to TK).
    D_in_128 = _round_up(D_in, LANE)
    n_k = max(1, _cdiv(D_in_128, max(tk_target, LANE)))
    TK = _round_up(_cdiv(D_in_128, n_k), LANE)
    D_in_pad = n_k * TK

    w1p = jnp.zeros((D_in_pad, H_PAD), w1_dtype).at[:D_in, :HIDDEN].set(
        w1.astype(w1_dtype))
    b1p = jnp.zeros((1, H_PAD), jnp.float32).at[0, :HIDDEN].set(
        b1.astype(jnp.float32))
    w2p = jnp.zeros((H_PAD, H_PAD), jnp.float32).at[:HIDDEN, :HIDDEN].set(
        w2.astype(jnp.float32))
    b2p = jnp.zeros((1, H_PAD), jnp.float32).at[0, :HIDDEN].set(
        b2.astype(jnp.float32))
    w3p = jnp.zeros((H_PAD, D_out_pad), jnp.float32).at[:HIDDEN, :D_out].set(
        w3.astype(jnp.float32))
    b3p = jnp.zeros((1, D_out_pad), jnp.float32).at[0, :D_out].set(
        b3.astype(jnp.float32))

    geom = URFGeometry(K=K, M=M, M_RF=M_RF, N=N,
                       D_in=D_in, D_in_pad=D_in_pad,
                       D_out=D_out, D_out_pad=D_out_pad,
                       TK=TK, n_k=n_k)
    return (w1p, b1p, w2p, b2p, w3p, b3p), geom


def _u_rf_mlp(h_rows, prepared, geom):
    """Run the padded 3-layer MLP on (B, D_in) flattened rows.

    Returns (cos, sin), each (B, D_out) float32.
    """
    w1p, b1p, w2p, b2p, w3p, b3p = prepared
    B, D_in = h_rows.shape
    assert D_in == geom.D_in, (D_in, geom.D_in)
    w1_dtype = w1p.dtype
    w_isz = jnp.dtype(w1_dtype).itemsize

    # Batch tiling: one block when small; tile (and megacore-shard) when big.
    B_pad = _round_up(max(B, 1), SUBLANE)
    if B_pad <= 64:
        TB = B_pad
    else:
        TB = 64
        B_pad = _round_up(B_pad, TB)
    n_b = B_pad // TB

    # Only the (small) activation row is padded per call; weights were padded
    # once in prepare_u_rf_params.
    h_pad = jnp.pad(h_rows.astype(w1_dtype),
                    ((0, B_pad - B), (0, geom.D_in_pad - D_in)))

    # Advisory cost estimate for XLA's scheduler around the custom call.
    cost = pl.CostEstimate(
        flops=2 * B_pad * (geom.D_in_pad * H_PAD + H_PAD * H_PAD
                           + H_PAD * geom.D_out_pad),
        transcendentals=B_pad * (2 * H_PAD + 3 * geom.D_out_pad),
        bytes_accessed=(w_isz * (geom.D_in_pad * H_PAD + B_pad * geom.D_in_pad)
                        + 4 * (H_PAD * H_PAD + H_PAD * geom.D_out_pad
                               + 2 * H_PAD + geom.D_out_pad
                               + 2 * B_pad * geom.D_out_pad)),
    )

    # Explicit VMEM budget from actual tiles (double-buffered streamed tiles +
    # resident w2/w3/bias/out blocks + accumulator), 2x headroom, capped at
    # 48 MiB to keep slack under v7x's 64 MiB physical VMEM.
    vmem_est = (
        2 * geom.TK * H_PAD * w_isz                            # w1 tiles x2
        + 2 * TB * geom.TK * w_isz                             # h tiles x2
        + 2 * (H_PAD * H_PAD + H_PAD * geom.D_out_pad) * 4     # w2, w3
        + 4 * SUBLANE * max(H_PAD, geom.D_out_pad) * 4         # biases
        + 2 * 2 * TB * geom.D_out_pad * 4                      # cos/sin outs
        + TB * H_PAD * 4                                       # acc scratch
    )
    vmem_limit = int(min(max(2 * vmem_est, 16 << 20), 48 << 20))

    cos_out, sin_out = pl.pallas_call(
        _u_rf_mlp_kernel,
        out_shape=(jax.ShapeDtypeStruct((B_pad, geom.D_out_pad), jnp.float32),
                   jax.ShapeDtypeStruct((B_pad, geom.D_out_pad), jnp.float32)),
        grid_spec=pltpu.PrefetchScalarGridSpec(
            num_scalar_prefetch=0,
            grid=(n_b, geom.n_k),
            in_specs=[
                pl.BlockSpec((TB, geom.TK), lambda b, k: (b, k)),         # h
                pl.BlockSpec((geom.TK, H_PAD), lambda b, k: (k, 0)),      # w1
                pl.BlockSpec((1, H_PAD), lambda b, k: (0, 0)),            # b1
                pl.BlockSpec((H_PAD, H_PAD), lambda b, k: (0, 0)),        # w2
                pl.BlockSpec((1, H_PAD), lambda b, k: (0, 0)),            # b2
                pl.BlockSpec((H_PAD, geom.D_out_pad), lambda b, k: (0, 0)),  # w3
                pl.BlockSpec((1, geom.D_out_pad), lambda b, k: (0, 0)),   # b3
            ],
            out_specs=[
                pl.BlockSpec((TB, geom.D_out_pad), lambda b, k: (b, 0)),  # cos
                pl.BlockSpec((TB, geom.D_out_pad), lambda b, k: (b, 0)),  # sin
            ],
            scratch_shapes=[pltpu.VMEM((TB, H_PAD), jnp.float32)],
        ),
        compiler_params=pltpu.CompilerParams(
            dimension_semantics=("parallel", "arbitrary"),
            vmem_limit_bytes=vmem_limit,
        ),
        cost_estimate=cost,
    )(h_pad, w1p, b1p, w2p, b2p, w3p, b3p)

    return cos_out[:B, :geom.D_out], sin_out[:B, :geom.D_out]


def u_rf_layer_forward(H, prepared, geom):
    """Pallas implementation of U_RF_layer.forward.

    H: (K, 2, M, N) float32  ->  (K, 2, M, M_RF) float32.
    The PyTorch per-k flatten loop is exactly a row-major reshape of
    (K, 2, M, N), so H_temp construction is pure layout glue in the wrapper.
    """
    h_rows = H.reshape(1, geom.D_in).astype(jnp.float32)
    cos_part, sin_part = _u_rf_mlp(h_rows, prepared, geom)
    cos_part = cos_part[0].reshape(geom.K, geom.M, geom.M_RF)
    sin_part = sin_part[0].reshape(geom.K, geom.M, geom.M_RF)
    # U_RF_out[k, 0] = cos(...), U_RF_out[k, 1] = sin(...)
    return jnp.stack([cos_part, sin_part], axis=1)  # (K, 2, M, M_RF)


def u_rf_layer_forward_batch(H_batch, prepared, geom):
    """Batched variant: H_batch (B, K, 2, M, N) -> (B, K, 2, M, M_RF).

    Streams w1 from HBM once per batch instead of once per sample (the single
    biggest structural lever when many channel realizations are evaluated).
    """
    B = H_batch.shape[0]
    h_rows = H_batch.reshape(B, geom.D_in).astype(jnp.float32)
    cos_part, sin_part = _u_rf_mlp(h_rows, prepared, geom)
    cos_part = cos_part.reshape(B, geom.K, geom.M, geom.M_RF)
    sin_part = sin_part.reshape(B, geom.K, geom.M, geom.M_RF)
    return jnp.stack([cos_part, sin_part], axis=2)  # (B, K, 2, M, M_RF)


def init_params(key, K, M, M_RF, N):
    """Deterministic init mimicking nn.Linear default (U(-1/sqrt(fan_in), .))."""
    D_in = 2 * K * M * N
    D_out = K * M * M_RF
    dims = [(D_in, HIDDEN), (HIDDEN, HIDDEN), (HIDDEN, D_out)]
    params = []
    keys = jax.random.split(key, 2 * len(dims))
    for i, (fan_in, fan_out) in enumerate(dims):
        bound = 1.0 / jnp.sqrt(jnp.float32(fan_in))
        w = jax.random.uniform(keys[2 * i], (fan_in, fan_out),
                               dtype=jnp.float32, minval=-bound, maxval=bound)
        b = jax.random.uniform(keys[2 * i + 1], (fan_out,),
                               dtype=jnp.float32, minval=-bound, maxval=bound)
        params += [w, b]
    return tuple(params)


def _reference_forward(H, params, *, K, M, M_RF, N):
    """Pure-JAX reference (mirrors the PyTorch forward exactly)."""
    w1, b1, w2, b2, w3, b3 = params
    h = H.reshape(-1)
    z1 = jax.nn.sigmoid(h @ w1 + b1)
    z2 = jax.nn.sigmoid(z1 @ w2 + b2)
    z3 = jax.nn.sigmoid(z2 @ w3 + b3)
    angles = z3 * TWO_PI
    cos_part = jnp.cos(angles).reshape(K, M, M_RF)
    sin_part = jnp.sin(angles).reshape(K, M, M_RF)
    return jnp.stack([cos_part, sin_part], axis=1)


if __name__ == "__main__":
    # Small shapes consistent with the module: K users, M antennas,
    # N subcarriers, M_RF RF chains. d is unused in forward.
    K, d, M, M_RF, N = 4, 2, 8, 4, 8

    key = jax.random.PRNGKey(0)
    k_h, k_p, k_hb = jax.random.split(key, 3)
    H = jax.random.normal(k_h, (K, 2, M, N), dtype=jnp.float32)
    params = init_params(k_p, K, M, M_RF, N)

    ref = _reference_forward(H, params, K=K, M=M, M_RF=M_RF, N=N)

    # --- Exact f32 path (w1 streamed in f32): strict 1e-5 parity. ---
    prep_f32, geom_f32 = prepare_u_rf_params(
        params, K=K, M=M, M_RF=M_RF, N=N, w1_dtype=jnp.float32)
    out_f32 = jax.block_until_ready(u_rf_layer_forward(H, prep_f32, geom_f32))
    assert out_f32.shape == (K, 2, M, M_RF), out_f32.shape
    assert jnp.allclose(out_f32, ref, atol=1e-5, rtol=1e-5), \
        float(jnp.max(jnp.abs(out_f32 - ref)))

    # --- Multi-step reduction grid (TK=128 -> 4 grid steps) exercises the
    #     pl.when init / accumulate / finalize path. ---
    prep_tiled, geom_tiled = prepare_u_rf_params(
        params, K=K, M=M, M_RF=M_RF, N=N, w1_dtype=jnp.float32, tk_target=128)
    out_tiled = jax.block_until_ready(
        u_rf_layer_forward(H, prep_tiled, geom_tiled))
    assert jnp.allclose(out_tiled, ref, atol=1e-5, rtol=1e-5), \
        float(jnp.max(jnp.abs(out_tiled - ref)))

    # --- Default bf16-streamed w1 (half the dominant HBM bytes); layers 2/3
    #     and accumulation stay f32, so drift is confined to the big matvec. ---
    prep_bf16, geom_bf16 = prepare_u_rf_params(params, K=K, M=M, M_RF=M_RF, N=N)
    out_bf16 = jax.block_until_ready(
        u_rf_layer_forward(H, prep_bf16, geom_bf16))
    assert jnp.allclose(out_bf16, ref, atol=2e-2, rtol=2e-2), \
        float(jnp.max(jnp.abs(out_bf16 - ref)))

    # --- Batched path: 8 channel realizations share one w1 stream. ---
    B = 8
    H_batch = jax.random.normal(k_hb, (B, K, 2, M, N), dtype=jnp.float32)
    out_batch = jax.block_until_ready(
        u_rf_layer_forward_batch(H_batch, prep_f32, geom_f32))
    assert out_batch.shape == (B, K, 2, M, M_RF), out_batch.shape
    for b in range(B):
        ref_b = _reference_forward(H_batch[b], params, K=K, M=M, M_RF=M_RF, N=N)
        assert jnp.allclose(out_batch[b], ref_b, atol=1e-5, rtol=1e-5), \
            (b, float(jnp.max(jnp.abs(out_batch[b] - ref_b))))

    print("KERNEL_OK")
</pallas_src>

<mosaic_0001>
module attributes {stable_mosaic.version = 11 : i64} {
  func.func @_u_rf_mlp_kernel(%arg0: i32, %arg1: i32, %arg2: memref<8x512xf32, #tpu.memory_space<vmem>>, %arg3: memref<512x128xf32, #tpu.memory_space<vmem>>, %arg4: memref<1x128xf32, #tpu.memory_space<vmem>>, %arg5: memref<128x128xf32, #tpu.memory_space<vmem>>, %arg6: memref<1x128xf32, #tpu.memory_space<vmem>>, %arg7: memref<128x128xf32, #tpu.memory_space<vmem>>, %arg8: memref<1x128xf32, #tpu.memory_space<vmem>>, %arg9: memref<8x128xf32, #tpu.memory_space<vmem>>, %arg10: memref<8x128xf32, #tpu.memory_space<vmem>>, %arg11: memref<8x128xf32, #tpu.memory_space<vmem>>) attributes {dimension_semantics = [#tpu.dimension_semantics<parallel>, #tpu.dimension_semantics<arbitrary>], iteration_bounds = array<i64: 1, 1>, scalar_prefetch = 0 : i64, scratch_operands = 1 : i64, tpu.core_type = #tpu.core_type<tc>, window_params = [{transform_indices = @transform_0, window_bounds = array<i64: 8, 512>}, {transform_indices = @transform_1, window_bounds = array<i64: 512, 128>}, {pipeline_mode = #tpu.pipeline_mode<synchronous>, transform_indices = @transform_2, window_bounds = array<i64: 1, 128>}, {pipeline_mode = #tpu.pipeline_mode<synchronous>, transform_indices = @transform_3, window_bounds = array<i64: 128, 128>}, {pipeline_mode = #tpu.pipeline_mode<synchronous>, transform_indices = @transform_4, window_bounds = array<i64: 1, 128>}, {pipeline_mode = #tpu.pipeline_mode<synchronous>, transform_indices = @transform_5, window_bounds = array<i64: 128, 128>}, {pipeline_mode = #tpu.pipeline_mode<synchronous>, transform_indices = @transform_6, window_bounds = array<i64: 1, 128>}, {transform_indices = @transform_7, window_bounds = array<i64: 8, 128>}, {transform_indices = @transform_8, window_bounds = array<i64: 8, 128>}]} {
    %c0_i32 = arith.constant 0 : i32
    %0 = arith.cmpi eq, %arg1, %c0_i32 : i32
    %1 = arith.extui %0 : i1 to i32
    %c0_i32_0 = arith.constant 0 : i32
    %2 = arith.cmpi ne, %1, %c0_i32_0 : i32
    scf.if %2 {
      %cst_10 = arith.constant 0.000000e+00 : f32
      %12 = vector.broadcast %cst_10 : f32 to vector<8x128xf32>
      %c0_11 = arith.constant 0 : index
      %c0_12 = arith.constant 0 : index
      %13 = vector.load %arg11[%c0_11, %c0_12] : memref<8x128xf32, #tpu.memory_space<vmem>>, vector<8x128xf32>
      tpu.vector_store %arg11[%c0_11, %c0_12], %12 {strides = array<i32>} : memref<8x128xf32, #tpu.memory_space<vmem>>, vector<8x128xf32>,
    } else {
    }
    %c0 = arith.constant 0 : index
    %c0_1 = arith.constant 0 : index
    %3 = vector.load %arg11[%c0, %c0_1] : memref<8x128xf32, #tpu.memory_space<vmem>>, vector<8x128xf32>
    %c0_2 = arith.constant 0 : index
    %c0_3 = arith.constant 0 : index
    %4 = vector.load %arg2[%c0_2, %c0_3] : memref<8x512xf32, #tpu.memory_space<vmem>>, vector<8x512xf32>
    %c0_4 = arith.constant 0 : index
    %c0_5 = arith.constant 0 : index
    %5 = vector.load %arg3[%c0_4, %c0_5] : memref<512x128xf32, #tpu.memory_space<vmem>>, vector<512x128xf32>
    %cst = arith.constant dense<0.000000e+00> : vector<8x128xf32>
    %6 = tpu.matmul %4, %5, %cst {dimension_numbers = #tpu.dot_dimension_numbers<[1], [0], [0], [1], [0, 0, 1, 1], [], []>} : vector<8x512xf32>, vector<512x128xf32>, vector<8x128xf32> -> vector<8x128xf32>
    %7 = arith.addf %3, %6 : vector<8x128xf32>
    %c0_6 = arith.constant 0 : index
    %c0_7 = arith.constant 0 : index
    %8 = vector.load %arg11[%c0_6, %c0_7] : memref<8x128xf32, #tpu.memory_space<vmem>>, vector<8x128xf32>
    tpu.vector_store %arg11[%c0_6, %c0_7], %7 {strides = array<i32>} : memref<8x128xf32, #tpu.memory_space<vmem>>, vector<8x128xf32>,
    %c0_i32_8 = arith.constant 0 : i32
    %9 = arith.cmpi eq, %arg1, %c0_i32_8 : i32
    %10 = arith.extui %9 : i1 to i32
    %c0_i32_9 = arith.constant 0 : i32
    %11 = arith.cmpi ne, %10, %c0_i32_9 : i32
    scf.if %11 {
      %c0_10 = arith.constant 0 : index
      %c0_11 = arith.constant 0 : index
      %12 = vector.load %arg11[%c0_10, %c0_11] : memref<8x128xf32, #tpu.memory_space<vmem>>, vector<8x128xf32>
      %c0_12 = arith.constant 0 : index
      %c0_13 = arith.constant 0 : index
      %13 = vector.load %arg4[%c0_12, %c0_13] : memref<1x128xf32, #tpu.memory_space<vmem>>, vector<1x128xf32>
      %14 = vector.broadcast %13 : vector<1x128xf32> to vector<8x128xf32>
      %15 = arith.addf %12, %14 : vector<8x128xf32>
      %16 = arith.negf %15 : vector<8x128xf32>
      %17 = math.exp %16 : vector<8x128xf32>
      %cst_14 = arith.constant 1.000000e+00 : f32
      %18 = vector.broadcast %cst_14 : f32 to vector<8x128xf32>
      %19 = arith.addf %18, %17 : vector<8x128xf32>
      %20 = arith.divf %18, %19 : vector<8x128xf32>
      %c0_15 = arith.constant 0 : index
      %c0_16 = arith.constant 0 : index
      %21 = vector.load %arg5[%c0_15, %c0_16] : memref<128x128xf32, #tpu.memory_space<vmem>>, vector<128x128xf32>
      %cst_17 = arith.constant dense<0.000000e+00> : vector<8x128xf32>
      %22 = tpu.matmul %20, %21, %cst_17 {dimension_numbers = #tpu.dot_dimension_numbers<[1], [0], [0], [1], [0, 0, 1, 1], [], []>} : vector<8x128xf32>, vector<128x128xf32>, vector<8x128xf32> -> vector<8x128xf32>
      %c0_18 = arith.constant 0 : index
      %c0_19 = arith.constant 0 : index
      %23 = vector.load %arg6[%c0_18, %c0_19] : memref<1x128xf32, #tpu.memory_space<vmem>>, vector<1x128xf32>
      %24 = vector.broadcast %23 : vector<1x128xf32> to vector<8x128xf32>
      %25 = arith.addf %22, %24 : vector<8x128xf32>
      %26 = arith.negf %25 : vector<8x128xf32>
      %27 = math.exp %26 : vector<8x128xf32>
      %cst_20 = arith.constant 1.000000e+00 : f32
      %28 = vector.broadcast %cst_20 : f32 to vector<8x128xf32>
      %29 = arith.addf %28, %27 : vector<8x128xf32>
      %30 = arith.divf %28, %29 : vector<8x128xf32>
      %c0_21 = arith.constant 0 : index
      %c0_22 = arith.constant 0 : index
      %31 = vector.load %arg7[%c0_21, %c0_22] : memref<128x128xf32, #tpu.memory_space<vmem>>, vector<128x128xf32>
      %cst_23 = arith.constant dense<0.000000e+00> : vector<8x128xf32>
      %32 = tpu.matmul %30, %31, %cst_23 {dimension_numbers = #tpu.dot_dimension_numbers<[1], [0], [0], [1], [0, 0, 1, 1], [], []>} : vector<8x128xf32>, vector<128x128xf32>, vector<8x128xf32> -> vector<8x128xf32>
      %c0_24 = arith.constant 0 : index
      %c0_25 = arith.constant 0 : index
      %33 = vector.load %arg8[%c0_24, %c0_25] : memref<1x128xf32, #tpu.memory_space<vmem>>, vector<1x128xf32>
      %34 = vector.broadcast %33 : vector<1x128xf32> to vector<8x128xf32>
      %35 = arith.addf %32, %34 : vector<8x128xf32>
      %36 = arith.negf %35 : vector<8x128xf32>
      %37 = math.exp %36 : vector<8x128xf32>
      %cst_26 = arith.constant 1.000000e+00 : f32
      %38 = vector.broadcast %cst_26 : f32 to vector<8x128xf32>
      %39 = arith.addf %38, %37 : vector<8x128xf32>
      %40 = arith.divf %38, %39 : vector<8x128xf32>
      %cst_27 = arith.constant 6.283185 : f32
      %41 = vector.broadcast %cst_27 : f32 to vector<8x128xf32>
      %42 = arith.mulf %40, %41 : vector<8x128xf32>
      %43 = math.cos %42 : vector<8x128xf32>
      %c0_28 = arith.constant 0 : index
      %c0_29 = arith.constant 0 : index
      %44 = vector.load %arg9[%c0_28, %c0_29] : memref<8x128xf32, #tpu.memory_space<vmem>>, vector<8x128xf32>
      tpu.vector_store %arg9[%c0_28, %c0_29], %43 {strides = array<i32>} : memref<8x128xf32, #tpu.memory_space<vmem>>, vector<8x128xf32>,
      %45 = math.sin %42 : vector<8x128xf32>
      %c0_30 = arith.constant 0 : index
      %c0_31 = arith.constant 0 : index
      %46 = vector.load %arg10[%c0_30, %c0_31] : memref<8x128xf32, #tpu.memory_space<vmem>>, vector<8x128xf32>
      tpu.vector_store %arg10[%c0_30, %c0_31], %45 {strides = array<i32>} : memref<8x128xf32, #tpu.memory_space<vmem>>, vector<8x128xf32>,
    } else {
    }
    return
  }
  func.func @transform_0(%arg0: i32, %arg1: i32) -> (i32, i32) {
    %c0_i32 = arith.constant 0 : i32
    return %arg0, %arg1 : i32, i32
  }
  func.func @transform_1(%arg0: i32, %arg1: i32) -> (i32, i32) {
    %c0_i32 = arith.constant 0 : i32
    %c0_i32_0 = arith.constant 0 : i32
    return %arg1, %c0_i32 : i32, i32
  }
  func.func @transform_2(%arg0: i32, %arg1: i32) -> (i32, i32) {
    %c0_i32 = arith.constant 0 : i32
    %c0_i32_0 = arith.constant 0 : i32
    %c0_i32_1 = arith.constant 0 : i32
    return %c0_i32, %c0_i32_0 : i32, i32
  }
  func.func @transform_3(%arg0: i32, %arg1: i32) -> (i32, i32) {
    %c0_i32 = arith.constant 0 : i32
    %c0_i32_0 = arith.constant 0 : i32
    %c0_i32_1 = arith.constant 0 : i32
    return %c0_i32, %c0_i32_0 : i32, i32
  }
  func.func @transform_4(%arg0: i32, %arg1: i32) -> (i32, i32) {
    %c0_i32 = arith.constant 0 : i32
    %c0_i32_0 = arith.constant 0 : i32
    %c0_i32_1 = arith.constant 0 : i32
    return %c0_i32, %c0_i32_0 : i32, i32
  }
  func.func @transform_5(%arg0: i32, %arg1: i32) -> (i32, i32) {
    %c0_i32 = arith.constant 0 : i32
    %c0_i32_0 = arith.constant 0 : i32
    %c0_i32_1 = arith.constant 0 : i32
    return %c0_i32, %c0_i32_0 : i32, i32
  }
  func.func @transform_6(%arg0: i32, %arg1: i32) -> (i32, i32) {
    %c0_i32 = arith.constant 0 : i32
    %c0_i32_0 = arith.constant 0 : i32
    %c0_i32_1 = arith.constant 0 : i32
    return %c0_i32, %c0_i32_0 : i32, i32
  }
  func.func @transform_7(%arg0: i32, %arg1: i32) -> (i32, i32) {
    %c0_i32 = arith.constant 0 : i32
    %c0_i32_0 = arith.constant 0 : i32
    return %arg0, %c0_i32 : i32, i32
  }
  func.func @transform_8(%arg0: i32, %arg1: i32) -> (i32, i32) {
    %c0_i32 = arith.constant 0 : i32
    %c0_i32_0 = arith.constant 0 : i32
    return %arg0, %c0_i32 : i32, i32
  }
}

</mosaic_0001>

<llo_original>
// kernel: tpu_custom_call.1
$region0: #{tpu_custom_call.1}
  #allocation0 [shape = 'u32[]', space=smem, size = 0x4, offset = 0x4, fixed_abs, tag = 'smem constant byte address 0x4 - core index']
  #allocation1 [shape = 'u32[72,128]{1,0:T(1,128)}', space=vmem, size = 0x9000, scoped, tag = 'internal scratch']
  #allocation2 [shape = 'f32[8,128]{1,0:T(8,128)}', space=vmem, size = 0x1000, scoped, tag = 'scratch operand']
  %s0 = inlined_call_operand.hbm [shape: f32[8,512], index: 0, kind: input, shape index: {}]
  %s1 = inlined_call_operand.hbm [shape: f32[512,128], index: 1, kind: input, shape index: {}]
  %s2 = inlined_call_operand.vmem [shape: f32[1,128], index: 2, kind: input, shape index: {}]
  %s3 = inlined_call_operand.hbm [shape: f32[128,128], index: 3, kind: input, shape index: {}]
  %s4 = inlined_call_operand.vmem [shape: f32[1,128], index: 4, kind: input, shape index: {}]
  %s5 = inlined_call_operand.hbm [shape: f32[128,128], index: 5, kind: input, shape index: {}]
  %s6 = inlined_call_operand.vmem [shape: f32[1,128], index: 6, kind: input, shape index: {}]
  %s7 = inlined_call_operand.hbm [shape: f32[8,128], index: 7, kind: output, shape index: {0}]
  %s8 = inlined_call_operand.hbm [shape: f32[8,128], index: 8, kind: output, shape index: {1}]
  %9 = xla_tuple %s7, %s8
  %s10 = sld [smem:[#allocation0]]
  $region70: #{tpu_custom_call.1} parent=0
    _
  %s12 = ssub.s32 1, %s10
  %s13 = scalar_select 0, %s12, %s10
  $region1: #{tpu_custom_call.1} parent=0
    #allocation3 [shape = 'u8[16384]{0}', space=vmem, size = 0x4000, scoped, tag = 'input window, operand 0, single buffered']
    #allocation4 [shape = 's32[1]{0}', space=sflag, size = 0x4, scoped, tag = 'scoped memory for tpu_custom_call.1']
    #allocation5 [shape = 's32[1]{0}', space=sflag, size = 0x4, scoped, tag = 'scoped memory for tpu_custom_call.1']
    #allocation6 [shape = 'u8[262144]{0}', space=vmem, size = 0x40000, scoped, tag = 'input window, operand 1, single buffered']
    #allocation7 [shape = 's32[1]{0}', space=sflag, size = 0x4, scoped, tag = 'scoped memory for tpu_custom_call.1']
    #allocation8 [shape = 'u8[65536]{0}', space=vmem, size = 0x10000, scoped, tag = 'input window, operand 3, single buffered']
    #allocation9 [shape = 'u8[65536]{0}', space=vmem, size = 0x10000, scoped, tag = 'input window, operand 5, single buffered']
    #allocation10 [shape = 's32[1]{0}', space=sflag, size = 0x4, scoped, tag = 'scoped memory for tpu_custom_call.1']
    #allocation11 [shape = 'u8[4096]{0}', space=vmem, size = 0x1000, scoped, tag = 'output window, operand 0, single buffered']
    #allocation12 [shape = 'u8[4096]{0}', space=vmem, size = 0x1000, scoped, tag = 'output window, operand 1, single buffered']
    #allocation13 [shape = 's32[1]{0}', space=sflag, size = 0x4, scoped, tag = 'scoped memory for tpu_custom_call.1']
    %14 = vsyncpa [#allocation4], 0
    %15 = vsyncpa [#allocation7], 0
    %16 = vsyncpa [#allocation10], 0
    %17 = vsyncpa [#allocation5], 0
    %18 = vsyncpa [#allocation13], 0
    // Predicated region
    $region2: #{tpu_custom_call.1} parent=1 // pred_check
      _
    $region3: #{tpu_custom_call.1} parent=1 // pred_check_branch
      %20 = sbr.rel (0) target = $region5
    $region4: #{tpu_custom_call.1} parent=1 // pred_region
      %22 = vsyncadd [#allocation4], 0
      %s24 = sshll.u32 %s0, 4
      %s25 = int_to_ptr.hbm [resolvable:$true] %s24
      %s26 = sshll.u32 [#allocation3], 4
      %s27 = int_to_ptr.vmem [resolvable:$true] %s26
      %29 = dma.hbm_to_vmem [thread:$0]  %s25, 512, %s27, [#allocation4]
    $region5: #{tpu_custom_call.1} parent=1 // pred_fallthru
      _
    // Predicated region
    $region6: #{tpu_custom_call.1} parent=1 // pred_check
      _
    $region7: #{tpu_custom_call.1} parent=1 // pred_check_branch
      %31 = sbr.rel (0) target = $region9
    $region8: #{tpu_custom_call.1} parent=1 // pred_region
      %33 = vsyncadd [#allocation7], 0
      %s34 = sshll.u32 %s1, 4
      %s35 = int_to_ptr.hbm [resolvable:$true] %s34
      %s36 = sshll.u32 [#allocation6], 4
      %s37 = int_to_ptr.vmem [resolvable:$true] %s36
      %42 = dma.hbm_to_vmem [thread:$0]  %s35, 8192, %s37, [#allocation7], 128, 128, 8
    $region9: #{tpu_custom_call.1} parent=1 // pred_fallthru
      _
    // Predicated region
    $region10: #{tpu_custom_call.1} parent=1 // pred_check
      _
    $region11: #{tpu_custom_call.1} parent=1 // pred_check_branch
      %44 = sbr.rel (0) target = $region13
    $region12: #{tpu_custom_call.1} parent=1 // pred_region
      _
    $region13: #{tpu_custom_call.1} parent=1 // pred_fallthru
      _
    // Predicated region
    $region14: #{tpu_custom_call.1} parent=1 // pred_check
      _
    $region15: #{tpu_custom_call.1} parent=1 // pred_check_branch
      %46 = sbr.rel (0) target = $region17
    $region16: #{tpu_custom_call.1} parent=1 // pred_region
      %48 = vsyncadd [#allocation7], 0
      %s49 = sshll.u32 %s3, 4
      %s50 = int_to_ptr.hbm [resolvable:$true] %s49
      %s51 = sshll.u32 [#allocation8], 4
      %s52 = int_to_ptr.vmem [resolvable:$true] %s51
      %57 = dma.hbm_to_vmem [thread:$0]  %s50, 2048, %s52, [#allocation7], 128, 128, 8
    $region17: #{tpu_custom_call.1} parent=1 // pred_fallthru
      _
    // Predicated region
    $region18: #{tpu_custom_call.1} parent=1 // pred_check
      _
    $region19: #{tpu_custom_call.1} parent=1 // pred_check_branch
      %59 = sbr.rel (0) target = $region21
    $region20: #{tpu_custom_call.1} parent=1 // pred_region
      _
    $region21: #{tpu_custom_call.1} parent=1 // pred_fallthru
      _
    // Predicated region
    $region22: #{tpu_custom_call.1} parent=1 // pred_check
      _
    $region23: #{tpu_custom_call.1} parent=1 // pred_check_branch
      %61 = sbr.rel (0) target = $region25
    $region24: #{tpu_custom_call.1} parent=1 // pred_region
      %63 = vsyncadd [#allocation10], 0
      %s64 = sshll.u32 %s5, 4
      %s65 = int_to_ptr.hbm [resolvable:$true] %s64
      %s66 = sshll.u32 [#allocation9], 4
      %s67 = int_to_ptr.vmem [resolvable:$true] %s66
      %72 = dma.hbm_to_vmem [thread:$0]  %s65, 2048, %s67, [#allocation10], 128, 128, 8
    $region25: #{tpu_custom_call.1} parent=1 // pred_fallthru
      _
    // Predicated region
    $region26: #{tpu_custom_call.1} parent=1 // pred_check
      _
    $region27: #{tpu_custom_call.1} parent=1 // pred_check_branch
      %74 = sbr.rel (0) target = $region29
    $region28: #{tpu_custom_call.1} parent=1 // pred_region
      _
    $region29: #{tpu_custom_call.1} parent=1 // pred_fallthru
      _
    // Predicated region
    $region30: #{tpu_custom_call.1} parent=1 // pred_check
      _
    $region31: #{tpu_custom_call.1} parent=1 // pred_check_branch
      %76 = sbr.rel (0) target = $region33
    $region32: #{tpu_custom_call.1} parent=1 // pred_region
      %78 = dma.done [#allocation4], 512
    $region33: #{tpu_custom_call.1} parent=1 // pred_fallthru
      _
    // Predicated region
    $region34: #{tpu_custom_call.1} parent=1 // pred_check
      _
    $region35: #{tpu_custom_call.1} parent=1 // pred_check_branch
      %80 = sbr.rel (0) target = $region37
    $region36: #{tpu_custom_call.1} parent=1 // pred_region
      %82 = dma.done [#allocation7], 8192
    $region37: #{tpu_custom_call.1} parent=1 // pred_fallthru
      _
    // Predicated region
    $region38: #{tpu_custom_call.1} parent=1 // pred_check
      _
    $region39: #{tpu_custom_call.1} parent=1 // pred_check_branch
      %84 = sbr.rel (0) target = $region41
    $region40: #{tpu_custom_call.1} parent=1 // pred_region
      %86 = dma.done [#allocation7], 2048
    $region41: #{tpu_custom_call.1} parent=1 // pred_fallthru
      _
    // Predicated region
    $region42: #{tpu_custom_call.1} parent=1 // pred_check
      _
    $region43: #{tpu_custom_call.1} parent=1 // pred_check_branch
      %88 = sbr.rel (0) target = $region45
    $region44: #{tpu_custom_call.1} parent=1 // pred_region
      %90 = dma.done [#allocation10], 2048
    $region45: #{tpu_custom_call.1} parent=1 // pred_fallthru
      _
    %p91 = scmp.eq.s32.totalorder 0, 0
    // Predicated region
    $region46: #{tpu_custom_call.1} parent=1 // pred_check
      %p92 = pneg %p91
    $region47: #{tpu_custom_call.1} parent=1 // pred_check_branch
      %94 = sbr.rel (%p92) target = $region49
    $region48: #{tpu_custom_call.1} parent=1 // pred_region
      %95 = vst [vmem:[#allocation2] sm:$0xff] 0.0
    $region49: #{tpu_custom_call.1} parent=1 // pred_fallthru
      _
    %v96 = vld [vmem:[#allocation2] sm:$0xff]
    %v97 = vld [vmem:[#allocation3] sm:$0xff]
    %v98 = vld [vmem:[#allocation3 + $0x8] sm:$0xff]
    %v99 = vld [vmem:[#allocation3 + $0x10] sm:$0xff]
    %v100 = vld [vmem:[#allocation3 + $0x18] sm:$0xff]
    %v101 = vld [vmem:[#allocation6] sm:$0xff]
    %v102 = vld [vmem:[#allocation6 + $0x8] sm:$0xff]
    %v103 = vld [vmem:[#allocation6 + $0x10] sm:$0xff]
    %v104 = vld [vmem:[#allocation6 + $0x18] sm:$0xff]
    %v105 = vld [vmem:[#allocation6 + $0x20] sm:$0xff]
    %v106 = vld [vmem:[#allocation6 + $0x28] sm:$0xff]
    %v107 = vld [vmem:[#allocation6 + $0x30] sm:$0xff]
    %v108 = vld [vmem:[#allocation6 + $0x38] sm:$0xff]
    %v109 = vld [vmem:[#allocation6 + $0x40] sm:$0xff]
    %v110 = vld [vmem:[#allocation6 + $0x48] sm:$0xff]
    %v111 = vld [vmem:[#allocation6 + $0x50] sm:$0xff]
    %v112 = vld [vmem:[#allocation6 + $0x58] sm:$0xff]
    %v113 = vld [vmem:[#allocation6 + $0x60] sm:$0xff]
    %v114 = vld [vmem:[#allocation6 + $0x68] sm:$0xff]
    %v115 = vld [vmem:[#allocation6 + $0x70] sm:$0xff]
    %v116 = vld [vmem:[#allocation6 + $0x78] sm:$0xff]
    %v117 = vld [vmem:[#allocation6 + $0x80] sm:$0xff]
    %v118 = vld [vmem:[#allocation6 + $0x88] sm:$0xff]
    %v119 = vld [vmem:[#allocation6 + $0x90] sm:$0xff]
    %v120 = vld [vmem:[#allocation6 + $0x98] sm:$0xff]
    %v121 = vld [vmem:[#allocation6 + $0xa0] sm:$0xff]
    %v122 = vld [vmem:[#allocation6 + $0xa8] sm:$0xff]
    %v123 = vld [vmem:[#allocation6 + $0xb0] sm:$0xff]
    %v124 = vld [vmem:[#allocation6 + $0xb8] sm:$0xff]
    %v125 = vld [vmem:[#allocation6 + $0xc0] sm:$0xff]
    %v126 = vld [vmem:[#allocation6 + $0xc8] sm:$0xff]
    %v127 = vld [vmem:[#allocation6 + $0xd0] sm:$0xff]
    %v128 = vld [vmem:[#allocation6 + $0xd8] sm:$0xff]
    %v129 = vld [vmem:[#allocation6 + $0xe0] sm:$0xff]
    %v130 = vld [vmem:[#allocation6 + $0xe8] sm:$0xff]
    %v131 = vld [vmem:[#allocation6 + $0xf0] sm:$0xff]
    %v132 = vld [vmem:[#allocation6 + $0xf8] sm:$0xff]
    %v133 = vld [vmem:[#allocation6 + $0x100] sm:$0xff]
    %v134 = vld [vmem:[#allocation6 + $0x108] sm:$0xff]
    %v135 = vld [vmem:[#allocation6 + $0x110] sm:$0xff]
    %v136 = vld [vmem:[#allocation6 + $0x118] sm:$0xff]
    %v137 = vld [vmem:[#allocation6 + $0x120] sm:$0xff]
    %v138 = vld [vmem:[#allocation6 + $0x128] sm:$0xff]
    %v139 = vld [vmem:[#allocation6 + $0x130] sm:$0xff]
    %v140 = vld [vmem:[#allocation6 + $0x138] sm:$0xff]
    %v141 = vld [vmem:[#allocation6 + $0x140] sm:$0xff]
    %v142 = vld [vmem:[#allocation6 + $0x148] sm:$0xff]
    %v143 = vld [vmem:[#allocation6 + $0x150] sm:$0xff]
    %v144 = vld [vmem:[#allocation6 + $0x158] sm:$0xff]
    %v145 = vld [vmem:[#allocation6 + $0x160] sm:$0xff]
    %v146 = vld [vmem:[#allocation6 + $0x168] sm:$0xff]
    %v147 = vld [vmem:[#allocation6 + $0x170] sm:$0xff]
    %v148 = vld [vmem:[#allocation6 + $0x178] sm:$0xff]
    %v149 = vld [vmem:[#allocation6 + $0x180] sm:$0xff]
    %v150 = vld [vmem:[#allocation6 + $0x188] sm:$0xff]
    %v151 = vld [vmem:[#allocation6 + $0x190] sm:$0xff]
    %v152 = vld [vmem:[#allocation6 + $0x198] sm:$0xff]
    %v153 = vld [vmem:[#allocation6 + $0x1a0] sm:$0xff]
    %v154 = vld [vmem:[#allocation6 + $0x1a8] sm:$0xff]
    %v155 = vld [vmem:[#allocation6 + $0x1b0] sm:$0xff]
    %v156 = vld [vmem:[#allocation6 + $0x1b8] sm:$0xff]
    %v157 = vld [vmem:[#allocation6 + $0x1c0] sm:$0xff]
    %v158 = vld [vmem:[#allocation6 + $0x1c8] sm:$0xff]
    %v159 = vld [vmem:[#allocation6 + $0x1d0] sm:$0xff]
    %v160 = vld [vmem:[#allocation6 + $0x1d8] sm:$0xff]
    %v161 = vld [vmem:[#allocation6 + $0x1e0] sm:$0xff]
    %v162 = vld [vmem:[#allocation6 + $0x1e8] sm:$0xff]
    %v163 = vld [vmem:[#allocation6 + $0x1f0] sm:$0xff]
    %v164 = vld [vmem:[#allocation6 + $0x1f8] sm:$0xff]
    %165 = vmatpush.msra.mxu0 %v116
    %166 = vmatpush.msra.mxu0 %v115
    %167 = vmatpush.msra.mxu0 %v114
    %168 = vmatpush.msra.mxu0 %v113
    %169 = vmatpush.msra.mxu0 %v112
    %170 = vmatpush.msra.mxu0 %v111
    %171 = vmatpush.msra.mxu0 %v110
    %172 = vmatpush.msra.mxu0 %v109
    %173 = vmatpush.msra.mxu0 %v108
    %174 = vmatpush.msra.mxu0 %v107
    %175 = vmatpush.msra.mxu0 %v106
    %176 = vmatpush.msra.mxu0 %v105
    %177 = vmatpush.msra.mxu0 %v104
    %178 = vmatpush.msra.mxu0 %v103
    %179 = vmatpush.msra.mxu0 %v102
    %180 = vmatpush.msra.mxu0 %v101
    %181 = vmatmul.f32.gmra.mxu0 %v97
    %v182 = vpop.f32.mrf.mxu0
    %v183 = vadd.f32 0.0, %v182
    %184 = vdwg.mxu0
    %185 = vmatpush.msra.mxu0 %v132
    %186 = vmatpush.msra.mxu0 %v131
    %187 = vmatpush.msra.mxu0 %v130
    %188 = vmatpush.msra.mxu0 %v129
    %189 = vmatpush.msra.mxu0 %v128
    %190 = vmatpush.msra.mxu0 %v127
    %191 = vmatpush.msra.mxu0 %v126
    %192 = vmatpush.msra.mxu0 %v125
    %193 = vmatpush.msra.mxu0 %v124
    %194 = vmatpush.msra.mxu0 %v123
    %195 = vmatpush.msra.mxu0 %v122
    %196 = vmatpush.msra.mxu0 %v121
    %197 = vmatpush.msra.mxu0 %v120
    %198 = vmatpush.msra.mxu0 %v119
    %199 = vmatpush.msra.mxu0 %v118
    %200 = vmatpush.msra.mxu0 %v117
    %201 = vmatmul.f32.gmra.mxu0 %v98
    %v202 = vpop.f32.mrf.mxu0
    %v203 = vadd.f32 %v183, %v202
    %204 = vdwg.mxu0
    %205 = vmatpush.msra.mxu0 %v148
    %206 = vmatpush.msra.mxu0 %v147
    %207 = vmatpush.msra.mxu0 %v146
    %208 = vmatpush.msra.mxu0 %v145
    %209 = vmatpush.msra.mxu0 %v144
    %210 = vmatpush.msra.mxu0 %v143
    %211 = vmatpush.msra.mxu0 %v142
    %212 = vmatpush.msra.mxu0 %v141
    %213 = vmatpush.msra.mxu0 %v140
    %214 = vmatpush.msra.mxu0 %v139
    %215 = vmatpush.msra.mxu0 %v138
    %216 = vmatpush.msra.mxu0 %v137
    %217 = vmatpush.msra.mxu0 %v136
    %218 = vmatpush.msra.mxu0 %v135
    %219 = vmatpush.msra.mxu0 %v134
    %220 = vmatpush.msra.mxu0 %v133
    %221 = vmatmul.f32.gmra.mxu0 %v99
    %v222 = vpop.f32.mrf.mxu0
    %v223 = vadd.f32 %v203, %v222
    %224 = vdwg.mxu0
    %225 = vmatpush.msra.mxu0 %v164
    %226 = vmatpush.msra.mxu0 %v163
    %227 = vmatpush.msra.mxu0 %v162
    %228 = vmatpush.msra.mxu0 %v161
    %229 = vmatpush.msra.mxu0 %v160
    %230 = vmatpush.msra.mxu0 %v159
    %231 = vmatpush.msra.mxu0 %v158
    %232 = vmatpush.msra.mxu0 %v157
    %233 = vmatpush.msra.mxu0 %v156
    %234 = vmatpush.msra.mxu0 %v155
    %235 = vmatpush.msra.mxu0 %v154
    %236 = vmatpush.msra.mxu0 %v153
    %237 = vmatpush.msra.mxu0 %v152
    %238 = vmatpush.msra.mxu0 %v151
    %239 = vmatpush.msra.mxu0 %v150
    %240 = vmatpush.msra.mxu0 %v149
    %241 = vmatmul.f32.gmra.mxu0 %v100
    %v242 = vpop.f32.mrf.mxu0
    %v243 = vadd.f32 %v223, %v242
    %244 = vdwg.mxu0
    %v245 = vadd.f32 %v96, %v243
    %246 = vst [vmem:[#allocation2] sm:$0xff] %v245
    // Predicated region
    $region50: #{tpu_custom_call.1} parent=1 // pred_check
      %p247 = pneg %p91
    $region51: #{tpu_custom_call.1} parent=1 // pred_check_branch
      %249 = sbr.rel (%p247) target = $region53
    $region52: #{tpu_custom_call.1} parent=1 // pred_region
      %v250 = vld [vmem:[#allocation2] sm:$0xff]
      %v251 = vld [vmem:[%s2] sm:$0x1]
      %v253 = vperm.slane %v251, 0
      %v255 = vadd.f32 %v250, %v253
      %v256 = vxor.u32 %v255, 2147483648
      %v257 = vmul.f32 %v256, 1.442695
      %v258 = vpow.pop %v257
      %v259 = vadd.f32 %v258, 1.0
      %v260 = vrcp.pop %v259
      %v261 = vmul.f32 %v259, %v260
      %v262 = vsub.f32 1.0, %v261
      %v263 = vmul.f32 %v260, %v262
      %v264 = vadd.f32 %v260, %v263
      %vm265 = vweird.f32 %v259
      %vm266 = vweird.f32 %v260
      %vm267 = vmor %vm265, %vm266
      %v268 = vsel %vm267, %v260, %v264
      %v269 = vand.u32 2147483647, %v259
      %vm270 = vcmp.eq.f32.partialorder %v269, 8.507059e+37
      %v271 = vand.u32 %v259, 2147483648
      %v272 = vor.u32 1.1754944e-38, %v271
      %v273 = vsel %vm270, %v272, %v268
      %v274 = vmul.f32 1.0, %v273
      %v275 = vld [vmem:[#allocation8] sm:$0xff]
      %v276 = vld [vmem:[#allocation8 + $0x8] sm:$0xff]
      %v277 = vld [vmem:[#allocation8 + $0x10] sm:$0xff]
      %v278 = vld [vmem:[#allocation8 + $0x18] sm:$0xff]
      %v279 = vld [vmem:[#allocation8 + $0x20] sm:$0xff]
      %v280 = vld [vmem:[#allocation8 + $0x28] sm:$0xff]
      %v281 = vld [vmem:[#allocation8 + $0x30] sm:$0xff]
      %v282 = vld [vmem:[#allocation8 + $0x38] sm:$0xff]
      %v283 = vld [vmem:[#allocation8 + $0x40] sm:$0xff]
      %v284 = vld [vmem:[#allocation8 + $0x48] sm:$0xff]
      %v285 = vld [vmem:[#allocation8 + $0x50] sm:$0xff]
      %v286 = vld [vmem:[#allocation8 + $0x58] sm:$0xff]
      %v287 = vld [vmem:[#allocation8 + $0x60] sm:$0xff]
      %v288 = vld [vmem:[#allocation8 + $0x68] sm:$0xff]
      %v289 = vld [vmem:[#allocation8 + $0x70] sm:$0xff]
      %v290 = vld [vmem:[#allocation8 + $0x78] sm:$0xff]
      %v291 = vld [vmem:[%s4] sm:$0x1]
      %v293 = vperm.slane %v291, 0
      %295 = vmatpush.msra.mxu0 %v290
      %296 = vmatpush.msra.mxu0 %v289
      %297 = vmatpush.msra.mxu0 %v288
      %298 = vmatpush.msra.mxu0 %v287
      %299 = vmatpush.msra.mxu0 %v286
      %300 = vmatpush.msra.mxu0 %v285
      %301 = vmatpush.msra.mxu0 %v284
      %302 = vmatpush.msra.mxu0 %v283
      %303 = vmatpush.msra.mxu0 %v282
      %304 = vmatpush.msra.mxu0 %v281
      %305 = vmatpush.msra.mxu0 %v280
      %306 = vmatpush.msra.mxu0 %v279
      %307 = vmatpush.msra.mxu0 %v278
      %308 = vmatpush.msra.mxu0 %v277
      %309 = vmatpush.msra.mxu0 %v276
      %310 = vmatpush.msra.mxu0 %v275
      %311 = vmatmul.f32.gmra.mxu0 %v274
      %v312 = vpop.f32.mrf.mxu0
      %v313 = vadd.f32 %v293, %v312
      %314 = vdwg.mxu0
      %v315 = vxor.u32 %v313, 2147483648
      %v316 = vmul.f32 %v315, 1.442695
      %v317 = vpow.pop %v316
      %v318 = vadd.f32 %v317, 1.0
      %v319 = vrcp.pop %v318
      %v320 = vmul.f32 %v318, %v319
      %v321 = vsub.f32 1.0, %v320
      %v322 = vmul.f32 %v319, %v321
      %v323 = vadd.f32 %v319, %v322
      %vm324 = vweird.f32 %v318
      %vm325 = vweird.f32 %v319
      %vm326 = vmor %vm324, %vm325
      %v327 = vsel %vm326, %v319, %v323
      %v328 = vand.u32 2147483647, %v318
      %vm329 = vcmp.eq.f32.partialorder %v328, 8.507059e+37
      %v330 = vand.u32 %v318, 2147483648
      %v331 = vor.u32 1.1754944e-38, %v330
      %v332 = vsel %vm329, %v331, %v327
      %v333 = vmul.f32 1.0, %v332
      %v334 = vld [vmem:[#allocation9] sm:$0xff]
      %v335 = vld [vmem:[#allocation9 + $0x8] sm:$0xff]
      %v336 = vld [vmem:[#allocation9 + $0x10] sm:$0xff]
      %v337 = vld [vmem:[#allocation9 + $0x18] sm:$0xff]
      %v338 = vld [vmem:[#allocation9 + $0x20] sm:$0xff]
      %v339 = vld [vmem:[#allocation9 + $0x28] sm:$0xff]
      %v340 = vld [vmem:[#allocation9 + $0x30] sm:$0xff]
      %v341 = vld [vmem:[#allocation9 + $0x38] sm:$0xff]
      %v342 = vld [vmem:[#allocation9 + $0x40] sm:$0xff]
      %v343 = vld [vmem:[#allocation9 + $0x48] sm:$0xff]
      %v344 = vld [vmem:[#allocation9 + $0x50] sm:$0xff]
      %v345 = vld [vmem:[#allocation9 + $0x58] sm:$0xff]
      %v346 = vld [vmem:[#allocation9 + $0x60] sm:$0xff]
      %v347 = vld [vmem:[#allocation9 + $0x68] sm:$0xff]
      %v348 = vld [vmem:[#allocation9 + $0x70] sm:$0xff]
      %v349 = vld [vmem:[#allocation9 + $0x78] sm:$0xff]
      %v350 = vld [vmem:[%s6] sm:$0x1]
      %v352 = vperm.slane %v350, 0
      %354 = vmatpush.msra.mxu0 %v349
      %355 = vmatpush.msra.mxu0 %v348
      %356 = vmatpush.msra.mxu0 %v347
      %357 = vmatpush.msra.mxu0 %v346
      %358 = vmatpush.msra.mxu0 %v345
      %359 = vmatpush.msra.mxu0 %v344
      %360 = vmatpush.msra.mxu0 %v343
      %361 = vmatpush.msra.mxu0 %v342
      %362 = vmatpush.msra.mxu0 %v341
      %363 = vmatpush.msra.mxu0 %v340
      %364 = vmatpush.msra.mxu0 %v339
      %365 = vmatpush.msra.mxu0 %v338
      %366 = vmatpush.msra.mxu0 %v337
      %367 = vmatpush.msra.mxu0 %v336
      %368 = vmatpush.msra.mxu0 %v335
      %369 = vmatpush.msra.mxu0 %v334
      %370 = vmatmul.f32.gmra.mxu0 %v333
      %v371 = vpop.f32.mrf.mxu0
      %v372 = vadd.f32 %v352, %v371
      %373 = vdwg.mxu0
      %v374 = vxor.u32 %v372, 2147483648
      %v375 = vmul.f32 %v374, 1.442695
      %v376 = vpow.pop %v375
      %v377 = vadd.f32 %v376, 1.0
      %v378 = vrcp.pop %v377
      %v379 = vmul.f32 %v377, %v378
      %v380 = vsub.f32 1.0, %v379
      %v381 = vmul.f32 %v378, %v380
      %v382 = vadd.f32 %v378, %v381
      %vm383 = vweird.f32 %v377
      %vm384 = vweird.f32 %v378
      %vm385 = vmor %vm383, %vm384
      %v386 = vsel %vm385, %v378, %v382
      %v387 = vand.u32 2147483647, %v377
      %vm388 = vcmp.eq.f32.partialorder %v387, 8.507059e+37
      %v389 = vand.u32 %v377, 2147483648
      %v390 = vor.u32 1.1754944e-38, %v389
      %v391 = vsel %vm388, %v390, %v386
      %v392 = vmul.f32 1.0, %v391
      %v393 = vmul.f32 %v392, 6.283185
      %v394 = vand.u32 2147483647, %v393
      %vm395 = vcmp.le.f32.partialorder %v394, 0.7853982
      %vm396 = vcmp.lt.s32.totalorder %v393, 0
      %v397 = vand.u32 %v393, 2139095040
      %v398 = vshrl.u32 %v397, 23
      %v399 = vsub.s32 %v398, 127
      %v400 = vand.u32 2147483647, %v393
      %v401 = vand.u32 %v400, 8388607
      %v402 = vor.u32 %v401, 8388608
      %v403 = vsub.s32 0, %v402
      %v404 = vadd.s32 %v399, 1
      %vm405 = vcmp.gt.s32.totalorder %v404, 0
      %v406 = vsel %vm405, %v404, 0
      %v407 = vshrl.u32 %v406, 5
      %v408 = vand.u32 %v406, 31
      %v409 = vsub.s32 32, %v408
      %v410 = vshrl.u32 683565275, %v409
      %v411 = vshll.u32 683565275, %v408
      %v412 = vshrl.u32 2475754826, %v409
      %v413 = vor.u32 %v411, %v412
      %v414 = vshll.u32 2475754826, %v408
      %v415 = vshrl.u32 2131351028, %v409
      %v416 = vor.u32 %v414, %v415
      %v417 = vshll.u32 2131351028, %v408
      %v418 = vshrl.u32 2102212464, %v409
      %v419 = vor.u32 %v417, %v418
      %v420 = vshll.u32 2102212464, %v408
      %v421 = vshrl.u32 920167782, %v409
      %v422 = vor.u32 %v420, %v421
      %v423 = vshll.u32 920167782, %v408
      %v424 = vshrl.u32 1326507024, %v409
      %v425 = vor.u32 %v423, %v424
      %vm426 = vcmp.lt.s32.totalorder %v407, 1
      %vm427 = vcmp.lt.s32.totalorder %v407, 2
      %vm428 = vcmp.lt.s32.totalorder %v407, 3
      %vm429 = vcmp.lt.s32.totalorder %v407, 4
      %v430 = vsel %vm426, %v410, %v413
      %v431 = vsel %vm429, %v419, 2102212464
      %v432 = vsel %vm428, %v416, %v431
      %v433 = vsel %vm427, %v430, %v432
      %v434 = vsel %vm426, %v413, %v416
      %v435 = vsel %vm429, %v422, 920167782
      %v436 = vsel %vm428, %v419, %v435
      %v437 = vsel %vm427, %v434, %v436
      %v438 = vsel %vm426, %v416, %v419
      %v439 = vsel %vm429, %v425, 1326507024
      %v440 = vsel %vm428, %v422, %v439
      %v441 = vsel %vm427, %v438, %v440
      %v442 = vshll.u32 %v402, 8
      %v443 = vand.u32 %v442, 65535
      %v444 = vshrl.u32 %v442, 16
      %v445 = vand.u32 %v441, 65535
      %v446 = vshrl.u32 %v441, 16
      %v447 = vmul.u32 %v443, %v445
      %v448 = vmul.u32 %v443, %v446
      %v449 = vmul.u32 %v444, %v445
      %v450 = vmul.u32 %v444, %v446
      %v451 = vshll.u32 %v448, 16
      %v452 = vshrl.u32 %v448, 16
      %v453 = vshll.u32 %v449, 16
      %v454 = vshrl.u32 %v449, 16
      %vm455 = vc.u32 %v447, %v451
      %v456 = vsel %vm455, 1, 0
      %v457 = vadd.s32 %v447, %v451
      %v458 = vadd.s32 %v450, %v456
      %vm459 = vc.u32 %v457, %v453
      %v460 = vsel %vm459, 1, 0
      %v461 = vadd.s32 %v457, %v453
      %v462 = vadd.s32 %v458, %v460
      %v463 = vadd.s32 %v462, %v452
      %v464 = vadd.s32 %v463, %v454
      %v465 = vand.u32 %v442, 65535
      %v466 = vshrl.u32 %v442, 16
      %v467 = vand.u32 %v437, 65535
      %v468 = vshrl.u32 %v437, 16
      %v469 = vmul.u32 %v465, %v467
      %v470 = vmul.u32 %v465, %v468
      %v471 = vmul.u32 %v466, %v467
      %v472 = vmul.u32 %v466, %v468
      %v473 = vshll.u32 %v470, 16
      %v474 = vshrl.u32 %v470, 16
      %v475 = vshll.u32 %v471, 16
      %v476 = vshrl.u32 %v471, 16
      %vm477 = vc.u32 %v469, %v473
      %v478 = vsel %vm477, 1, 0
      %v479 = vadd.s32 %v469, %v473
      %v480 = vadd.s32 %v472, %v478
      %vm481 = vc.u32 %v479, %v475
      %v482 = vsel %vm481, 1, 0
      %v483 = vadd.s32 %v479, %v475
      %v484 = vadd.s32 %v480, %v482
      %v485 = vadd.s32 %v484, %v474
      %v486 = vadd.s32 %v485, %v476
      %v487 = vmul.u32 %v442, %v433
      %v488 = vadd.s32 %v464, %v483
      %vm489 = vc.u32 %v464, %v483
      %v490 = vadd.s32 %v486, 1
      %v491 = vsel %vm489, %v490, %v486
      %v492 = vadd.s32 %v487, %v491
      %v493 = vadd.s32 %v492, 536870912
      %v494 = vshrl.u32 %v493, 30
      %v495 = vshll.u32 %v494, 30
      %v496 = vsub.s32 %v492, %v495
      %vm497 = vcmp.lt.s32.totalorder %v496, 0
      %v498 = vsub.s32 0, %v496
      %v499 = vsel %vm497, %v498, %v496
      %v500 = vclz %v499
      %v501 = vsub.s32 %v500, 2
      %vm502 = vcmp.gt.s32.totalorder 0, %v501
      %v503 = vsel %vm502, 0, %v501
      %v504 = vsub.s32 32, %v503
      %v505 = vshll.u32 %v496, %v503
      %v506 = vshrl.u32 %v488, %v504
      %v507 = vor.u32 %v505, %v506
      %v508 = vsub.s32 4294967266, %v503
      %v509 = vadd.s32 %v508, 127
      %v510 = vshll.u32 %v509, 23
      %v511 = vor.u32 4788187, %v510
      %v512 = vand.u32 2147483647, %v511
      %v514 = vcvt.s32.f32 %v507
      %v515 = vmul.f32 %v514, %v512
      %v516 = vxor.u32 %v515, 2147483648
      %v517 = vsel %vm396, %v516, %v515
      %v518 = vsub.s32 4, %v494
      %v519 = vsel %vm396, %v518, %v494
      %v520 = vsel %vm395, %v393, %v517
      %v521 = vsel %vm395, 0, %v519
      %v522 = vmul.f32 %v520, %v520
      %v523 = vmul.f32 %v522, -0.001358992
      %v524 = vadd.f32 %v523, 0.041655596
      %v525 = vmul.f32 %v522, %v524
      %v526 = vadd.f32 %v525, -0.4999988
      %v527 = vmul.f32 %v522, %v526
      %v528 = vadd.f32 1.0, %v527
      %v529 = vmul.f32 %v520, %v520
      %v530 = vmul.f32 %v529, -0.00019511016
      %v531 = vadd.f32 %v530, 0.008332121
      %v532 = vmul.f32 %v529, %v531
      %v533 = vadd.f32 %v532, -0.16666654
      %v534 = vmul.f32 %v529, %v533
      %v535 = vadd.f32 %v534, 1.0
      %v536 = vmul.f32 %v535, %v520
      %vm537 = vweird.f32 %v393
      %v538 = vand.u32 %v521, 3
      %vm539 = vcmp.lt.s32.totalorder %v538, 2
      %vm540 = vcmp.eq.s32.totalorder %v538, 0
      %v541 = vxor.u32 %v536, 2147483648
      %v542 = vsel %vm540, %v528, %v541
      %vm543 = vcmp.eq.s32.totalorder %v538, 2
      %v544 = vxor.u32 %v528, 2147483648
      %v545 = vsel %vm543, %v544, %v536
      %v546 = vsel %vm539, %v542, %v545
      %v547 = vsel %vm537, nan, %v546
      %548 = vst [vmem:[#allocation11] sm:$0xff] %v547
      %v549 = vand.u32 2147483647, %v393
      %vm550 = vcmp.le.f32.partialorder %v549, 0.7853982
      %vm551 = vcmp.lt.s32.totalorder %v393, 0
      %v552 = vand.u32 %v393, 2139095040
      %v553 = vshrl.u32 %v552, 23
      %v554 = vsub.s32 %v553, 127
      %v555 = vand.u32 2147483647, %v393
      %v556 = vand.u32 %v555, 8388607
      %v557 = vor.u32 %v556, 8388608
      %v558 = vsub.s32 0, %v557
      %v559 = vadd.s32 %v554, 1
      %vm560 = vcmp.gt.s32.totalorder %v559, 0
      %v561 = vsel %vm560, %v559, 0
      %v562 = vshrl.u32 %v561, 5
      %v563 = vand.u32 %v561, 31
      %v564 = vsub.s32 32, %v563
      %v565 = vshrl.u32 683565275, %v564
      %v566 = vshll.u32 683565275, %v563
      %v567 = vshrl.u32 2475754826, %v564
      %v568 = vor.u32 %v566, %v567
      %v569 = vshll.u32 2475754826, %v563
      %v570 = vshrl.u32 2131351028, %v564
      %v571 = vor.u32 %v569, %v570
      %v572 = vshll.u32 2131351028, %v563
      %v573 = vshrl.u32 2102212464, %v564
      %v574 = vor.u32 %v572, %v573
      %v575 = vshll.u32 2102212464, %v563
      %v576 = vshrl.u32 920167782, %v564
      %v577 = vor.u32 %v575, %v576
      %v578 = vshll.u32 920167782, %v563
      %v579 = vshrl.u32 1326507024, %v564
      %v580 = vor.u32 %v578, %v579
      %vm581 = vcmp.lt.s32.totalorder %v562, 1
      %vm582 = vcmp.lt.s32.totalorder %v562, 2
      %vm583 = vcmp.lt.s32.totalorder %v562, 3
      %vm584 = vcmp.lt.s32.totalorder %v562, 4
      %v585 = vsel %vm581, %v565, %v568
      %v586 = vsel %vm584, %v574, 2102212464
      %v587 = vsel %vm583, %v571, %v586
      %v588 = vsel %vm582, %v585, %v587
      %v589 = vsel %vm581, %v568, %v571
      %v590 = vsel %vm584, %v577, 920167782
      %v591 = vsel %vm583, %v574, %v590
      %v592 = vsel %vm582, %v589, %v591
      %v593 = vsel %vm581, %v571, %v574
      %v594 = vsel %vm584, %v580, 1326507024
      %v595 = vsel %vm583, %v577, %v594
      %v596 = vsel %vm582, %v593, %v595
      %v597 = vshll.u32 %v557, 8
      %v598 = vand.u32 %v597, 65535
      %v599 = vshrl.u32 %v597, 16
      %v600 = vand.u32 %v596, 65535
      %v601 = vshrl.u32 %v596, 16
      %v602 = vmul.u32 %v598, %v600
      %v603 = vmul.u32 %v598, %v601
      %v604 = vmul.u32 %v599, %v600
      %v605 = vmul.u32 %v599, %v601
      %v606 = vshll.u32 %v603, 16
      %v607 = vshrl.u32 %v603, 16
      %v608 = vshll.u32 %v604, 16
      %v609 = vshrl.u32 %v604, 16
      %vm610 = vc.u32 %v602, %v606
      %v611 = vsel %vm610, 1, 0
      %v612 = vadd.s32 %v602, %v606
      %v613 = vadd.s32 %v605, %v611
      %vm614 = vc.u32 %v612, %v608
      %v615 = vsel %vm614, 1, 0
      %v616 = vadd.s32 %v612, %v608
      %v617 = vadd.s32 %v613, %v615
      %v618 = vadd.s32 %v617, %v607
      %v619 = vadd.s32 %v618, %v609
      %v620 = vand.u32 %v597, 65535
      %v621 = vshrl.u32 %v597, 16
      %v622 = vand.u32 %v592, 65535
      %v623 = vshrl.u32 %v592, 16
      %v624 = vmul.u32 %v620, %v622
      %v625 = vmul.u32 %v620, %v623
      %v626 = vmul.u32 %v621, %v622
      %v627 = vmul.u32 %v621, %v623
      %v628 = vshll.u32 %v625, 16
      %v629 = vshrl.u32 %v625, 16
      %v630 = vshll.u32 %v626, 16
      %v631 = vshrl.u32 %v626, 16
      %vm632 = vc.u32 %v624, %v628
      %v633 = vsel %vm632, 1, 0
      %v634 = vadd.s32 %v624, %v628
      %v635 = vadd.s32 %v627, %v633
      %vm636 = vc.u32 %v634, %v630
      %v637 = vsel %vm636, 1, 0
      %v638 = vadd.s32 %v634, %v630
      %v639 = vadd.s32 %v635, %v637
      %v640 = vadd.s32 %v639, %v629
      %v641 = vadd.s32 %v640, %v631
      %v642 = vmul.u32 %v597, %v588
      %v643 = vadd.s32 %v619, %v638
      %vm644 = vc.u32 %v619, %v638
      %v645 = vadd.s32 %v641, 1
      %v646 = vsel %vm644, %v645, %v641
      %v647 = vadd.s32 %v642, %v646
      %v648 = vadd.s32 %v647, 536870912
      %v649 = vshrl.u32 %v648, 30
      %v650 = vshll.u32 %v649, 30
      %v651 = vsub.s32 %v647, %v650
      %vm652 = vcmp.lt.s32.totalorder %v651, 0
      %v653 = vsub.s32 0, %v651
      %v654 = vsel %vm652, %v653, %v651
      %v655 = vclz %v654
      %v656 = vsub.s32 %v655, 2
      %vm657 = vcmp.gt.s32.totalorder 0, %v656
      %v658 = vsel %vm657, 0, %v656
      %v659 = vsub.s32 32, %v658
      %v660 = vshll.u32 %v651, %v658
      %v661 = vshrl.u32 %v643, %v659
      %v662 = vor.u32 %v660, %v661
      %v663 = vsub.s32 4294967266, %v658
      %v664 = vadd.s32 %v663, 127
      %v665 = vshll.u32 %v664, 23
      %v666 = vor.u32 4788187, %v665
      %v667 = vand.u32 2147483647, %v666
      %v669 = vcvt.s32.f32 %v662
      %v670 = vmul.f32 %v669, %v667
      %v671 = vxor.u32 %v670, 2147483648
      %v672 = vsel %vm551, %v671, %v670
      %v673 = vsub.s32 4, %v649
      %v674 = vsel %vm551, %v673, %v649
      %v675 = vsel %vm550, %v393, %v672
      %v676 = vsel %vm550, 0, %v674
      %v677 = vmul.f32 %v675, %v675
      %v678 = vmul.f32 %v677, -0.001358992
      %v679 = vadd.f32 %v678, 0.041655596
      %v680 = vmul.f32 %v677, %v679
      %v681 = vadd.f32 %v680, -0.4999988
      %v682 = vmul.f32 %v677, %v681
      %v683 = vadd.f32 1.0, %v682
      %v684 = vmul.f32 %v675, %v675
      %v685 = vmul.f32 %v684, -0.00019511016
      %v686 = vadd.f32 %v685, 0.008332121
      %v687 = vmul.f32 %v684, %v686
      %v688 = vadd.f32 %v687, -0.16666654
      %v689 = vmul.f32 %v684, %v688
      %v690 = vadd.f32 %v689, 1.0
      %v691 = vmul.f32 %v690, %v675
      %vm692 = vweird.f32 %v393
      %v693 = vadd.s32 %v676, 3
      %v694 = vand.u32 %v693, 3
      %vm695 = vcmp.lt.s32.totalorder %v694, 2
      %vm696 = vcmp.eq.s32.totalorder %v694, 0
      %v697 = vxor.u32 %v691, 2147483648
      %v698 = vsel %vm696, %v683, %v697
      %vm699 = vcmp.eq.s32.totalorder %v694, 2
      %v700 = vxor.u32 %v683, 2147483648
      %v701 = vsel %vm699, %v700, %v691
      %v702 = vsel %vm695, %v698, %v701
      %v703 = vsel %vm692, nan, %v702
      %704 = vst [vmem:[#allocation12] sm:$0xff] %v703
    $region53: #{tpu_custom_call.1} parent=1 // pred_fallthru
      _
    // Predicated region
    $region54: #{tpu_custom_call.1} parent=1 // pred_check
      _
    $region55: #{tpu_custom_call.1} parent=1 // pred_check_branch
      %706 = sbr.rel (0) target = $region57
    $region56: #{tpu_custom_call.1} parent=1 // pred_region
      %708 = vsyncadd [#allocation5], 0
      %s710 = sshll.u32 [#allocation11], 4
      %s711 = int_to_ptr.vmem [resolvable:$true] %s710
      %s712 = sshll.u32 %s7, 4
      %s713 = int_to_ptr.hbm [resolvable:$true] %s712
      %715 = dma.vmem_to_hbm [thread:$0]  %s711, 128, %s713, [#allocation5]
    $region57: #{tpu_custom_call.1} parent=1 // pred_fallthru
      _
    // Predicated region
    $region58: #{tpu_custom_call.1} parent=1 // pred_check
      _
    $region59: #{tpu_custom_call.1} parent=1 // pred_check_branch
      %717 = sbr.rel (0) target = $region61
    $region60: #{tpu_custom_call.1} parent=1 // pred_region
      %719 = vsyncadd [#allocation13], 0
      %s721 = sshll.u32 [#allocation12], 4
      %s722 = int_to_ptr.vmem [resolvable:$true] %s721
      %s723 = sshll.u32 %s8, 4
      %s724 = int_to_ptr.hbm [resolvable:$true] %s723
      %726 = dma.vmem_to_hbm [thread:$0]  %s722, 128, %s724, [#allocation13]
    $region61: #{tpu_custom_call.1} parent=1 // pred_fallthru
      _
    // Predicated region
    $region62: #{tpu_custom_call.1} parent=1 // pred_check
      _
    $region63: #{tpu_custom_call.1} parent=1 // pred_check_branch
      %728 = sbr.rel (0) target = $region65
    $region64: #{tpu_custom_call.1} parent=1 // pred_region
      %730 = dma.done [#allocation5], 128
    $region65: #{tpu_custom_call.1} parent=1 // pred_fallthru
      _
    // Predicated region
    $region66: #{tpu_custom_call.1} parent=1 // pred_check
      _
    $region67: #{tpu_custom_call.1} parent=1 // pred_check_branch
      %732 = sbr.rel (0) target = $region69
    $region68: #{tpu_custom_call.1} parent=1 // pred_region
      %734 = dma.done [#allocation13], 128
    $region69: #{tpu_custom_call.1} parent=1 // pred_fallthru
      _
    %735 = vsyncpa [#allocation4], 1
    %736 = vsyncpa [#allocation7], 1
    %737 = vsyncpa [#allocation10], 1
    %738 = vsyncpa [#allocation5], 1
    %739 = vsyncpa [#allocation13], 1

</llo_original>
